<compile_context>
chip_gen: v6e
topology: v6e:2x2x1
jax: 0.10.0
libtpu: 0.0.40
codegen_flags: <defaults>
</compile_context>

<pallas_src>
import jax
import jax.numpy as jnp
from jax import lax
from jax.experimental import pallas as pl
from jax.experimental.pallas import tpu as pltpu


# ----------------------------- single time-step ------------------------------

def irnn_cell_kernel(x_ref, h_ref, wT_ref, ub_ref, o_ref):
    # x_ref, h_ref, o_ref: (bm, D); wT_ref: (D, D) pre-transposed;
    # ub_ref: (2, D) with row 0 = u, row 1 = b.
    ub = ub_ref[...]
    z = lax.dot_general(
        x_ref[...], wT_ref[...],
        dimension_numbers=(((1,), (0,)), ((), ())),   # x @ w.T (wT pre-transposed)
        preferred_element_type=jnp.float32,
    )
    pre = z + ub[1:2, :].astype(jnp.float32) \
            + h_ref[...].astype(jnp.float32) * ub[0:1, :].astype(jnp.float32)
    o_ref[...] = jnp.maximum(pre, 0.0).astype(o_ref.dtype)


def irnn_cell(x_t, h_tm1, w, u, b, *, bm=None):
    """Single IndRNN step: relu(x_t @ w.T + b + h_tm1 * u).

    Parity / correctness path only (matches IRNNCell.forward exactly). For
    sequences use `irnn_sequence`: calling this in an outer scan re-DMAs w
    every step and pays a full pallas_call launch per timestep.
    """
    B, D = x_t.shape
    assert w.shape == (D, D), "handout module requires inpdim == recdim"
    if bm is None:
        bm = B
    assert B % bm == 0
    assert bm == B or bm % 8 == 0, "bm must be the full batch or a multiple of 8"

    wT = jnp.transpose(w)              # one-time transpose -> (K, N) MXU layout
    ub = jnp.stack([u, b], axis=0).astype(jnp.float32)   # (2, D): one param DMA

    return pl.pallas_call(
        irnn_cell_kernel,
        out_shape=jax.ShapeDtypeStruct((B, D), x_t.dtype),
        grid_spec=pltpu.PrefetchScalarGridSpec(
            num_scalar_prefetch=0,
            grid=(B // bm,),
            in_specs=[
                pl.BlockSpec((bm, D), lambda i: (i, 0)),   # x_t tile
                pl.BlockSpec((bm, D), lambda i: (i, 0)),   # h_tm1 tile
                pl.BlockSpec((D, D), lambda i: (0, 0)),    # w.T (resident)
                pl.BlockSpec((2, D), lambda i: (0, 0)),    # [u; b]
            ],
            out_specs=pl.BlockSpec((bm, D), lambda i: (i, 0)),
        ),
        compiler_params=pltpu.CompilerParams(
            dimension_semantics=("parallel",),
        ),
    )(x_t, h_tm1, wT, ub)


# -------------------- fused, time-chunked T-step sequence --------------------

def irnn_seq_kernel(x_ref, h0_ref, wT_ref, ub_ref, o_ref, h_scr):
    # x_ref, o_ref: (tc, bm, D) time-chunk blocks; h0_ref: (bm, D);
    # wT_ref: (D, D); ub_ref: (2, D) f32; h_scr: (bm, D) f32 hidden-state carry.
    c = pl.program_id(1)               # time-chunk index (innermost, sequential)
    tc, bm, D = x_ref.shape

    @pl.when(c == 0)
    def _():
        h_scr[...] = h0_ref[...].astype(jnp.float32)

    # One big MXU contraction for the whole chunk: (tc*bm, D) @ (D, D).
    # bm % 8 == 0 and D % 128 == 0, so the reshapes stay within (8,128) tiles.
    x2d = x_ref[...].reshape(tc * bm, D)
    z = lax.dot_general(
        x2d, wT_ref[...],
        dimension_numbers=(((1,), (0,)), ((), ())),
        preferred_element_type=jnp.float32,
    ).reshape(tc, bm, D)

    # Hoist the (1, D) -> (bm, D) broadcasts out of the unrolled time loop
    # (JAX does not CSE broadcast_in_dim).
    u_bc = jnp.broadcast_to(ub_ref[0:1, :].astype(jnp.float32), (bm, D))
    b_bc = jnp.broadcast_to(ub_ref[1:2, :].astype(jnp.float32), (bm, D))

    # Serial part is only the cheap VPU recurrence; tc is a compile-time
    # constant so this fully unrolls with static slices/stores.
    h = h_scr[...]
    for t in range(tc):
        h = jnp.maximum(z[t] + b_bc + h * u_bc, 0.0)
        o_ref[t] = h.astype(o_ref.dtype)
    h_scr[...] = h


def _choose_time_chunk(T, bm, D, elem_bytes, target_m=256, max_block_bytes=4 << 20):
    """Smallest divisor of T with tc*bm >= target_m, capped by x-block bytes."""
    tc = 1
    for d in range(1, T + 1):
        if T % d:
            continue
        if d * bm * D * elem_bytes > max_block_bytes and tc >= 1:
            break
        tc = d
        if d * bm >= target_m:
            break
    return tc


def irnn_sequence(x, h0, w, u, b, *, bm=None, tc=None, compute_dtype=None):
    """Apply the IRNN cell over a (T, B, D) sequence in ONE pallas_call.

    Returns all hidden states h[1..T], shape (T, B, D). Weights/biases stay
    resident in VMEM (constant index_map); the hidden state is carried in a
    VMEM f32 scratch across the sequential ("arbitrary") innermost time-chunk
    axis; the batch axis is "parallel" (megacore-shardable).

    compute_dtype: optional MXU feed dtype for x / w.T (e.g. jnp.bfloat16 on
    v6e/v7x). The recurrence, hidden-state carry and output stay in f32.
    """
    T, B, D = x.shape
    assert w.shape == (D, D), "handout module requires inpdim == recdim"
    out_dtype = x.dtype

    if bm is None:
        # >= 2 batch tiles when possible so v7x's 2 TensorCores both get work.
        bm = B // 2 if B % 16 == 0 else B
    assert B % bm == 0
    assert bm == B or bm % 8 == 0, "bm must be the full batch or a multiple of 8"

    cd = jnp.dtype(compute_dtype) if compute_dtype is not None else jnp.dtype(x.dtype)
    if tc is None:
        tc = _choose_time_chunk(T, bm, D, cd.itemsize)
    assert T % tc == 0, "time chunk must divide T"

    x_in = x.astype(cd)
    wT = jnp.transpose(w).astype(cd)                      # (K, N) MXU layout
    ub = jnp.stack([u, b], axis=0).astype(jnp.float32)    # (2, D)

    # Explicit VMEM budget: resident weight + double-buffered x/out chunks +
    # params + carry, with headroom; capped at 64 MiB (safe on v5e/v6e/v7x).
    vmem_bytes = (
        2 * tc * bm * D * cd.itemsize                    # x chunk (double-buffered)
        + 2 * tc * bm * D * jnp.dtype(out_dtype).itemsize  # out chunk
        + 2 * D * D * cd.itemsize                        # w.T
        + 2 * 2 * D * 4                                  # [u; b]
        + 2 * bm * D * jnp.dtype(h0.dtype).itemsize      # h0 tile
        + bm * D * 4                                     # h_scr
    )
    vmem_limit = min(max(2 * vmem_bytes, 32 << 20), 64 << 20)

    grid = (B // bm, T // tc)   # batch tiles parallel, time chunks sequential last
    return pl.pallas_call(
        irnn_seq_kernel,
        out_shape=jax.ShapeDtypeStruct((T, B, D), out_dtype),
        grid_spec=pltpu.PrefetchScalarGridSpec(
            num_scalar_prefetch=0,
            grid=grid,
            in_specs=[
                pl.BlockSpec((tc, bm, D), lambda i, c: (c, i, 0)),  # x chunk
                pl.BlockSpec((bm, D), lambda i, c: (i, 0)),         # h0
                pl.BlockSpec((D, D), lambda i, c: (0, 0)),          # w.T (resident)
                pl.BlockSpec((2, D), lambda i, c: (0, 0)),          # [u; b]
            ],
            out_specs=pl.BlockSpec((tc, bm, D), lambda i, c: (c, i, 0)),
            scratch_shapes=[pltpu.VMEM((bm, D), jnp.float32)],
        ),
        compiler_params=pltpu.CompilerParams(
            dimension_semantics=("parallel", "arbitrary"),
            vmem_limit_bytes=int(vmem_limit),
        ),
    )(x_in, h0, wT, ub)


# --------------------------------- reference ----------------------------------

def irnn_cell_ref(x_t, h_tm1, w, u, b):
    return jnp.maximum(x_t @ w.T + b + h_tm1 * u, 0.0)


if __name__ == "__main__":
    key = jax.random.PRNGKey(0)
    T, B, D = 16, 16, 128   # seq=16, batch=16, inpdim=recdim=128 (lane-dense)

    k_x, k_h, k_w, k_u, k_b = jax.random.split(key, 5)
    x_seq = jax.random.normal(k_x, (T, B, D), dtype=jnp.float32)
    h0 = jax.random.normal(k_h, (B, D), dtype=jnp.float32)
    w = jax.random.normal(k_w, (D, D), dtype=jnp.float32) * 0.1
    u = jax.random.uniform(k_u, (D,), dtype=jnp.float32) * 0.9   # stable recurrence
    b = jax.random.normal(k_b, (D,), dtype=jnp.float32) * 0.1

    # --- single-step cell (matches IRNNCell.forward exactly) ---
    h1 = jax.block_until_ready(irnn_cell(x_seq[0], h0, w, u, b))
    h1_ref = irnn_cell_ref(x_seq[0], h0, w, u, b)
    assert h1.shape == (B, D)
    assert jnp.allclose(h1, h1_ref, atol=2e-3, rtol=2e-3), "single-step mismatch"

    # --- reference scan for the sequence ---
    def step(h, x_t):
        h_new = irnn_cell_ref(x_t, h, w, u, b)
        return h_new, h_new
    _, hs_ref = lax.scan(step, h0, x_seq)

    # --- fused time-chunked scan (one pallas_call, one matmul per chunk) ---
    hs = jax.block_until_ready(irnn_sequence(x_seq, h0, w, u, b))
    assert hs.shape == (T, B, D)
    assert jnp.allclose(hs, hs_ref, atol=2e-3, rtol=2e-3), "sequence mismatch"

    # --- bf16 MXU feed (v6e/v7x fast path), f32 recurrence & output ---
    hs_bf = jax.block_until_ready(
        irnn_sequence(x_seq, h0, w, u, b, compute_dtype=jnp.bfloat16))
    assert hs_bf.shape == (T, B, D)
    assert bool(jnp.all(jnp.isfinite(hs_bf)))
    assert jnp.allclose(hs_bf, hs_ref, atol=1e-1, rtol=1e-1), "bf16 sequence mismatch"

    print("KERNEL_OK")
</pallas_src>

<mosaic_0001>
module attributes {stable_mosaic.version = 11 : i64} {
  func.func @irnn_cell_kernel(%arg0: i32, %arg1: memref<16x128xf32, #tpu.memory_space<vmem>>, %arg2: memref<16x128xf32, #tpu.memory_space<vmem>>, %arg3: memref<128x128xf32, #tpu.memory_space<vmem>>, %arg4: memref<2x128xf32, #tpu.memory_space<vmem>>, %arg5: memref<16x128xf32, #tpu.memory_space<vmem>>) attributes {dimension_semantics = [#tpu.dimension_semantics<parallel>], iteration_bounds = array<i64: 1>, scalar_prefetch = 0 : i64, scratch_operands = 0 : i64, tpu.core_type = #tpu.core_type<tc>, window_params = [{transform_indices = @transform_0, window_bounds = array<i64: 16, 128>}, {transform_indices = @transform_1, window_bounds = array<i64: 16, 128>}, {pipeline_mode = #tpu.pipeline_mode<synchronous>, transform_indices = @transform_2, window_bounds = array<i64: 128, 128>}, {pipeline_mode = #tpu.pipeline_mode<synchronous>, transform_indices = @transform_3, window_bounds = array<i64: 2, 128>}, {transform_indices = @transform_4, window_bounds = array<i64: 16, 128>}]} {
    %c0 = arith.constant 0 : index
    %c0_0 = arith.constant 0 : index
    %0 = vector.load %arg4[%c0, %c0_0] : memref<2x128xf32, #tpu.memory_space<vmem>>, vector<2x128xf32>
    %c0_1 = arith.constant 0 : index
    %c0_2 = arith.constant 0 : index
    %1 = vector.load %arg1[%c0_1, %c0_2] : memref<16x128xf32, #tpu.memory_space<vmem>>, vector<16x128xf32>
    %c0_3 = arith.constant 0 : index
    %c0_4 = arith.constant 0 : index
    %2 = vector.load %arg3[%c0_3, %c0_4] : memref<128x128xf32, #tpu.memory_space<vmem>>, vector<128x128xf32>
    %cst = arith.constant dense<0.000000e+00> : vector<16x128xf32>
    %3 = tpu.matmul %1, %2, %cst {dimension_numbers = #tpu.dot_dimension_numbers<[1], [0], [0], [1], [0, 0, 1, 1], [], []>} : vector<16x128xf32>, vector<128x128xf32>, vector<16x128xf32> -> vector<16x128xf32>
    %4 = vector.extract_strided_slice %0 {offsets = [1, 0], sizes = [1, 128], strides = [1, 1]} : vector<2x128xf32> to vector<1x128xf32>
    %5 = vector.broadcast %4 : vector<1x128xf32> to vector<16x128xf32>
    %6 = arith.addf %3, %5 : vector<16x128xf32>
    %c0_5 = arith.constant 0 : index
    %c0_6 = arith.constant 0 : index
    %7 = vector.load %arg2[%c0_5, %c0_6] : memref<16x128xf32, #tpu.memory_space<vmem>>, vector<16x128xf32>
    %8 = vector.extract_strided_slice %0 {offsets = [0, 0], sizes = [1, 128], strides = [1, 1]} : vector<2x128xf32> to vector<1x128xf32>
    %9 = vector.broadcast %8 : vector<1x128xf32> to vector<16x128xf32>
    %10 = arith.mulf %7, %9 : vector<16x128xf32>
    %11 = arith.addf %6, %10 : vector<16x128xf32>
    %cst_7 = arith.constant 0.000000e+00 : f32
    %12 = vector.broadcast %cst_7 : f32 to vector<16x128xf32>
    %13 = arith.maximumf %11, %12 : vector<16x128xf32>
    %c0_8 = arith.constant 0 : index
    %c0_9 = arith.constant 0 : index
    %14 = vector.load %arg5[%c0_8, %c0_9] : memref<16x128xf32, #tpu.memory_space<vmem>>, vector<16x128xf32>
    tpu.vector_store %arg5[%c0_8, %c0_9], %13 {strides = array<i32>} : memref<16x128xf32, #tpu.memory_space<vmem>>, vector<16x128xf32>,
    return
  }
  func.func @transform_0(%arg0: i32) -> (i32, i32) {
    %c0_i32 = arith.constant 0 : i32
    %c0_i32_0 = arith.constant 0 : i32
    return %arg0, %c0_i32 : i32, i32
  }
  func.func @transform_1(%arg0: i32) -> (i32, i32) {
    %c0_i32 = arith.constant 0 : i32
    %c0_i32_0 = arith.constant 0 : i32
    return %arg0, %c0_i32 : i32, i32
  }
  func.func @transform_2(%arg0: i32) -> (i32, i32) {
    %c0_i32 = arith.constant 0 : i32
    %c0_i32_0 = arith.constant 0 : i32
    %c0_i32_1 = arith.constant 0 : i32
    return %c0_i32, %c0_i32_0 : i32, i32
  }
  func.func @transform_3(%arg0: i32) -> (i32, i32) {
    %c0_i32 = arith.constant 0 : i32
    %c0_i32_0 = arith.constant 0 : i32
    %c0_i32_1 = arith.constant 0 : i32
    return %c0_i32, %c0_i32_0 : i32, i32
  }
  func.func @transform_4(%arg0: i32) -> (i32, i32) {
    %c0_i32 = arith.constant 0 : i32
    %c0_i32_0 = arith.constant 0 : i32
    return %arg0, %c0_i32 : i32, i32
  }
}

</mosaic_0001>

<llo_original>
// kernel: tpu_custom_call.1
$region0: #{tpu_custom_call.1}
  #allocation0 [shape = 'u32[]', space=smem, size = 0x4, offset = 0x4, fixed_abs, tag = 'smem constant byte address 0x4 - core index']
  #allocation1 [shape = 'u32[144,128]{1,0:T(1,128)}', space=vmem, size = 0x12000, scoped, tag = 'internal scratch']
  %s0 = inlined_call_operand.hbm [shape: f32[16,128], index: 0, kind: input, shape index: {}]
  %s1 = inlined_call_operand.hbm [shape: f32[16,128], index: 1, kind: input, shape index: {}]
  %s2 = inlined_call_operand.hbm [shape: f32[128,128], index: 2, kind: input, shape index: {}]
  %s3 = inlined_call_operand.vmem [shape: f32[2,128], index: 3, kind: input, shape index: {}]
  %s4 = inlined_call_operand.hbm [shape: f32[16,128], index: 4, kind: output, shape index: {}]
  %s5 = sld [smem:[#allocation0]]
  $region38: #{tpu_custom_call.1} parent=0
    _
  %s7 = ssub.s32 1, %s5
  %s8 = scalar_select 0, %s7, %s5
  $region1: #{tpu_custom_call.1} parent=0
    #allocation2 [shape = 'u8[8192]{0}', space=vmem, size = 0x2000, scoped, tag = 'input window, operand 0, single buffered']
    #allocation3 [shape = 's32[1]{0}', space=sflag, size = 0x4, scoped, tag = 'scoped memory for tpu_custom_call.1']
    #allocation4 [shape = 's32[1]{0}', space=sflag, size = 0x4, scoped, tag = 'scoped memory for tpu_custom_call.1']
    #allocation5 [shape = 'u8[8192]{0}', space=vmem, size = 0x2000, scoped, tag = 'input window, operand 1, single buffered']
    #allocation6 [shape = 's32[1]{0}', space=sflag, size = 0x4, scoped, tag = 'scoped memory for tpu_custom_call.1']
    #allocation7 [shape = 'u8[65536]{0}', space=vmem, size = 0x10000, scoped, tag = 'input window, operand 2, single buffered']
    #allocation8 [shape = 'u8[8192]{0}', space=vmem, size = 0x2000, scoped, tag = 'output window, operand 0, single buffered']
    %9 = vsyncpa [#allocation3], 0
    %10 = vsyncpa [#allocation6], 0
    %11 = vsyncpa [#allocation4], 0
    // Predicated region
    $region2: #{tpu_custom_call.1} parent=1 // pred_check
      _
    $region3: #{tpu_custom_call.1} parent=1 // pred_check_branch
      %13 = sbr.rel (0) target = $region5
    $region4: #{tpu_custom_call.1} parent=1 // pred_region
      %s15 = ssub.s32 256, 256
      %16 = vsyncadd [#allocation3], %s15
      %s17 = sshll.u32 [#allocation2], 4
      %s18 = int_to_ptr.vmem [resolvable:$true] %s17
      %23 = dma.hbm_to_vmem [thread:$0]  %s0, 256, %s18, [#allocation3], 128, 128, 8
    $region5: #{tpu_custom_call.1} parent=1 // pred_fallthru
      _
    // Predicated region
    $region6: #{tpu_custom_call.1} parent=1 // pred_check
      _
    $region7: #{tpu_custom_call.1} parent=1 // pred_check_branch
      %25 = sbr.rel (0) target = $region9
    $region8: #{tpu_custom_call.1} parent=1 // pred_region
      %s27 = ssub.s32 256, 256
      %28 = vsyncadd [#allocation6], %s27
      %s29 = sshll.u32 [#allocation5], 4
      %s30 = int_to_ptr.vmem [resolvable:$true] %s29
      %35 = dma.hbm_to_vmem [thread:$0]  %s1, 256, %s30, [#allocation6], 128, 128, 8
    $region9: #{tpu_custom_call.1} parent=1 // pred_fallthru
      _
    // Predicated region
    $region10: #{tpu_custom_call.1} parent=1 // pred_check
      _
    $region11: #{tpu_custom_call.1} parent=1 // pred_check_branch
      %37 = sbr.rel (0) target = $region13
    $region12: #{tpu_custom_call.1} parent=1 // pred_region
      %s39 = ssub.s32 2048, 2048
      %40 = vsyncadd [#allocation6], %s39
      %s41 = sshll.u32 [#allocation7], 4
      %s42 = int_to_ptr.vmem [resolvable:$true] %s41
      %47 = dma.hbm_to_vmem [thread:$0]  %s2, 2048, %s42, [#allocation6], 128, 128, 8
    $region13: #{tpu_custom_call.1} parent=1 // pred_fallthru
      _
    // Predicated region
    $region14: #{tpu_custom_call.1} parent=1 // pred_check
      _
    $region15: #{tpu_custom_call.1} parent=1 // pred_check_branch
      %49 = sbr.rel (0) target = $region17
    $region16: #{tpu_custom_call.1} parent=1 // pred_region
      _
    $region17: #{tpu_custom_call.1} parent=1 // pred_fallthru
      _
    // Predicated region
    $region18: #{tpu_custom_call.1} parent=1 // pred_check
      _
    $region19: #{tpu_custom_call.1} parent=1 // pred_check_branch
      %51 = sbr.rel (0) target = $region21
    $region20: #{tpu_custom_call.1} parent=1 // pred_region
      %52 = dma.done [#allocation3], 256
    $region21: #{tpu_custom_call.1} parent=1 // pred_fallthru
      _
    // Predicated region
    $region22: #{tpu_custom_call.1} parent=1 // pred_check
      _
    $region23: #{tpu_custom_call.1} parent=1 // pred_check_branch
      %54 = sbr.rel (0) target = $region25
    $region24: #{tpu_custom_call.1} parent=1 // pred_region
      %55 = dma.done [#allocation6], 256
    $region25: #{tpu_custom_call.1} parent=1 // pred_fallthru
      _
    // Predicated region
    $region26: #{tpu_custom_call.1} parent=1 // pred_check
      _
    $region27: #{tpu_custom_call.1} parent=1 // pred_check_branch
      %57 = sbr.rel (0) target = $region29
    $region28: #{tpu_custom_call.1} parent=1 // pred_region
      %58 = dma.done [#allocation6], 2048
    $region29: #{tpu_custom_call.1} parent=1 // pred_fallthru
      _
    %v59 = vld [vmem:[%s3] sm:$0x3]
    %v60 = vld [vmem:[#allocation2] sm:$0xff]
    %v61 = vld [vmem:[#allocation2 + $0x8] sm:$0xff]
    %v62 = vld [vmem:[#allocation7] sm:$0xff]
    %v63 = vld [vmem:[#allocation7 + $0x8] sm:$0xff]
    %v64 = vld [vmem:[#allocation7 + $0x10] sm:$0xff]
    %v65 = vld [vmem:[#allocation7 + $0x18] sm:$0xff]
    %v66 = vld [vmem:[#allocation7 + $0x20] sm:$0xff]
    %v67 = vld [vmem:[#allocation7 + $0x28] sm:$0xff]
    %v68 = vld [vmem:[#allocation7 + $0x30] sm:$0xff]
    %v69 = vld [vmem:[#allocation7 + $0x38] sm:$0xff]
    %v70 = vld [vmem:[#allocation7 + $0x40] sm:$0xff]
    %v71 = vld [vmem:[#allocation7 + $0x48] sm:$0xff]
    %v72 = vld [vmem:[#allocation7 + $0x50] sm:$0xff]
    %v73 = vld [vmem:[#allocation7 + $0x58] sm:$0xff]
    %v74 = vld [vmem:[#allocation7 + $0x60] sm:$0xff]
    %v75 = vld [vmem:[#allocation7 + $0x68] sm:$0xff]
    %v76 = vld [vmem:[#allocation7 + $0x70] sm:$0xff]
    %v77 = vld [vmem:[#allocation7 + $0x78] sm:$0xff]
    %v78 = vlaneseq
    %v79 = vshrl.u32 %v78, 7
    %v80 = vsub.s32 1, %v79
    %v81 = vrot.slane %v59, %v80
    %82 = vmatprep.subr.mxu0 0.0
    %83 = vmatpush1.msra.mxu0 %v77
    %84 = vmatprep.subr.mxu0 0.0
    %85 = vmatpush1.msra.mxu0 %v76
    %86 = vmatprep.subr.mxu0 0.0
    %87 = vmatpush1.msra.mxu0 %v75
    %88 = vmatprep.subr.mxu0 0.0
    %89 = vmatpush1.msra.mxu0 %v74
    %90 = vmatprep.subr.mxu0 0.0
    %91 = vmatpush1.msra.mxu0 %v73
    %92 = vmatprep.subr.mxu0 0.0
    %93 = vmatpush1.msra.mxu0 %v72
    %94 = vmatprep.subr.mxu0 0.0
    %95 = vmatpush1.msra.mxu0 %v71
    %96 = vmatprep.subr.mxu0 0.0
    %97 = vmatpush1.msra.mxu0 %v70
    %98 = vmatprep.subr.mxu0 0.0
    %99 = vmatpush1.msra.mxu0 %v69
    %100 = vmatprep.subr.mxu0 0.0
    %101 = vmatpush1.msra.mxu0 %v68
    %102 = vmatprep.subr.mxu0 0.0
    %103 = vmatpush1.msra.mxu0 %v67
    %104 = vmatprep.subr.mxu0 0.0
    %105 = vmatpush1.msra.mxu0 %v66
    %106 = vmatprep.subr.mxu0 0.0
    %107 = vmatpush1.msra.mxu0 %v65
    %108 = vmatprep.subr.mxu0 0.0
    %109 = vmatpush1.msra.mxu0 %v64
    %110 = vmatprep.subr.mxu0 0.0
    %111 = vmatpush1.msra.mxu0 %v63
    %112 = vmatprep.subr.mxu0 0.0
    %113 = vmatpush1.msra.mxu0 %v62
    %114 = vmatprep.subr.mxu0 0.0
    %115 = vmatpush2.msra.mxu0 0.0
    %116 = vmatprep.subr.mxu0 0.0
    %117 = vmatpush2.msra.mxu0 0.0
    %118 = vmatprep.subr.mxu0 0.0
    %119 = vmatpush2.msra.mxu0 0.0
    %120 = vmatprep.subr.mxu0 0.0
    %121 = vmatpush2.msra.mxu0 0.0
    %122 = vmatprep.subr.mxu0 0.0
    %123 = vmatpush2.msra.mxu0 0.0
    %124 = vmatprep.subr.mxu0 0.0
    %125 = vmatpush2.msra.mxu0 0.0
    %126 = vmatprep.subr.mxu0 0.0
    %127 = vmatpush2.msra.mxu0 0.0
    %128 = vmatprep.subr.mxu0 0.0
    %129 = vmatpush2.msra.mxu0 0.0
    %130 = vmatprep.subr.mxu0 0.0
    %131 = vmatpush2.msra.mxu0 0.0
    %132 = vmatprep.subr.mxu0 0.0
    %133 = vmatpush2.msra.mxu0 0.0
    %134 = vmatprep.subr.mxu0 0.0
    %135 = vmatpush2.msra.mxu0 0.0
    %136 = vmatprep.subr.mxu0 0.0
    %137 = vmatpush2.msra.mxu0 0.0
    %138 = vmatprep.subr.mxu0 0.0
    %139 = vmatpush2.msra.mxu0 0.0
    %140 = vmatprep.subr.mxu0 0.0
    %141 = vmatpush2.msra.mxu0 0.0
    %142 = vmatprep.subr.mxu0 0.0
    %143 = vmatpush2.msra.mxu0 0.0
    %144 = vmatprep.subr.mxu0 0.0
    %145 = vmatpush2.msra.mxu0 0.0
    %146 = vmatprep.mubr.f32.mxu0 0.0
    %147 = vmatmul.mubr.f32.gmra.mxu0 %v60
    %v148 = vpop.f32.mrf.mxu0
    %v149 = vadd.f32 %v81, %v148
    %v150 = vpop.f32.mrf.mxu0
    %151 = vmatprep.mubr.f32.mxu0 0.0
    %152 = vmatmul.mubr.f32.gmra.mxu0 %v61
    %v153 = vpop.f32.mrf.mxu0
    %v154 = vadd.f32 %v81, %v153
    %v155 = vpop.f32.mrf.mxu0
    %156 = vdwg.mxu0
    %v157 = vld [vmem:[#allocation5] sm:$0xff]
    %v158 = vld [vmem:[#allocation5 + $0x8] sm:$0xff]
    %v159 = vlaneseq
    %v160 = vshrl.u32 %v159, 7
    %v161 = vsub.s32 0, %v160
    %v162 = vrot.slane %v59, %v161
    %v163 = vmul.f32 %v157, %v162
    %v164 = vmul.f32 %v158, %v162
    %v165 = vadd.f32 %v149, %v163
    %v166 = vadd.f32 %v154, %v164
    %v167 = vmax.f32 %v165, 0.0
    %v168 = vmax.f32 %v166, 0.0
    %169 = vst [vmem:[#allocation8] sm:$0xff] %v167
    %170 = vst [vmem:[#allocation8 + $0x8] sm:$0xff] %v168
    // Predicated region
    $region30: #{tpu_custom_call.1} parent=1 // pred_check
      _
    $region31: #{tpu_custom_call.1} parent=1 // pred_check_branch
      %172 = sbr.rel (0) target = $region33
    $region32: #{tpu_custom_call.1} parent=1 // pred_region
      %s174 = ssub.s32 256, 256
      %175 = vsyncadd [#allocation4], %s174
      %s176 = sshll.u32 [#allocation8], 4
      %s177 = int_to_ptr.vmem [resolvable:$true] %s176
      %182 = dma.vmem_to_hbm [thread:$0]  %s177, 256, %s4, [#allocation4], 128, 128, 8
    $region33: #{tpu_custom_call.1} parent=1 // pred_fallthru
      _
    // Predicated region
    $region34: #{tpu_custom_call.1} parent=1 // pred_check
      _
    $region35: #{tpu_custom_call.1} parent=1 // pred_check_branch
      %184 = sbr.rel (0) target = $region37
    $region36: #{tpu_custom_call.1} parent=1 // pred_region
      %185 = dma.done [#allocation4], 256
    $region37: #{tpu_custom_call.1} parent=1 // pred_fallthru
      _
    %186 = vsyncpa [#allocation3], 1
    %187 = vsyncpa [#allocation6], 1
    %188 = vsyncpa [#allocation4], 1

</llo_original>
